<compile_context>
chip_gen: v7x
topology: tpu7x:2x2x1
jax: 0.10.0
libtpu: 0.0.40
codegen_flags: <defaults>
</compile_context>

<pallas_src>
import jax
import jax.numpy as jnp
from jax.experimental import pallas as pl
from jax.experimental.pallas import tpu as pltpu


def _pooler_head_kernel(x_ref, w1_ref, shift_ref, w2_ref, b2_ref,
                        out_ref, h_acc, out_acc):
    """Fused Linear -> (folded BN) -> ReLU -> Linear for one batch tile."""
    h_i = pl.program_id(1)
    k_i = pl.program_id(2)
    n_h = pl.num_programs(1)
    n_k = pl.num_programs(2)

    # Fresh output accumulator at the start of each batch tile.
    @pl.when(jnp.logical_and(h_i == 0, k_i == 0))
    def _():
        out_acc[...] = jnp.zeros_like(out_acc)

    # Fresh hidden accumulator at the start of each hidden tile.
    @pl.when(k_i == 0)
    def _():
        h_acc[...] = jnp.zeros_like(h_acc)

    # First matmul: accumulate x_tile @ W1_eff_tile over the pn (k) axis.
    h_acc[...] += jnp.dot(x_ref[...], w1_ref[...],
                          preferred_element_type=jnp.float32)

    # Hidden tile complete: shift (BN + bias folded) + ReLU, then accumulate
    # this hidden tile's contribution to the second matmul.
    @pl.when(k_i == n_k - 1)
    def _():
        h = jnp.maximum(h_acc[...] + shift_ref[...], 0.0)
        out_acc[...] += jnp.dot(h.astype(w2_ref.dtype), w2_ref[...],
                                preferred_element_type=jnp.float32)

    # Final write-back (bias of the second Linear added once here).
    @pl.when(jnp.logical_and(h_i == n_h - 1, k_i == n_k - 1))
    def _():
        out_ref[...] = (out_acc[...] + b2_ref[...]).astype(out_ref.dtype)


def _pick_tile(n, candidates):
    """Largest candidate tile that divides n, else n itself (full extent)."""
    for t in candidates:
        if t <= n and n % t == 0:
            return t
    return n


def pooler_head(x, params, *, eps=1e-5):
    """Forward pass of Pooler_Head (eval mode).

    x: [B, seq_len, d_model]  ->  out: [B, 64]
    params: w1 [pn, pn//2], b1 [pn//2], gamma/beta/running_mean/running_var
            [pn//2], w2 [pn//2, 64], b2 [64].
    """
    B = x.shape[0]
    pn = x.shape[-2] * x.shape[-1]
    hidden = params["w1"].shape[1]
    n_out = params["w2"].shape[1]

    # Flatten(start_dim=-2) in the wrapper: layout plumbing only, keeps the
    # contraction axis lane-dense.
    xf = x.reshape(B, pn)

    # Fold BatchNorm1d (eval) + Linear1 bias into the weights (one-time
    # parameter folding, independent of the batch):
    #   BN(x@W1 + b1) = x @ (W1 * scale) + ((b1 - mean) * scale + beta)
    scale = (params["gamma"].astype(jnp.float32) *
             jax.lax.rsqrt(params["running_var"].astype(jnp.float32) + eps))
    w1_eff = (params["w1"].astype(jnp.float32) * scale[None, :]).astype(
        params["w1"].dtype)
    shift_eff = ((params["b1"].astype(jnp.float32)
                  - params["running_mean"].astype(jnp.float32)) * scale
                 + params["beta"].astype(jnp.float32))
    shift_eff = shift_eff.reshape(1, hidden)
    b2r = params["b2"].reshape(1, n_out).astype(jnp.float32)

    # Tile sizes: full arrays for small shapes, capped for large ones so the
    # double-buffered blocks fit comfortably in VMEM on all generations.
    tb = _pick_tile(B, (256, 128, 64, 32, 16, 8))
    tk = _pick_tile(pn, (1024, 512, 256, 128))
    th = _pick_tile(hidden, (512, 256, 128))

    grid = (B // tb, hidden // th, pn // tk)

    out = pl.pallas_call(
        _pooler_head_kernel,
        out_shape=jax.ShapeDtypeStruct((B, n_out), x.dtype),
        grid=grid,
        in_specs=[
            pl.BlockSpec((tb, tk), lambda b, h, k: (b, k)),       # x
            pl.BlockSpec((tk, th), lambda b, h, k: (k, h)),       # W1 (BN folded)
            pl.BlockSpec((1, th), lambda b, h, k: (0, h)),        # shift (+b1)
            pl.BlockSpec((th, n_out), lambda b, h, k: (h, 0)),    # W2
            pl.BlockSpec((1, n_out), lambda b, h, k: (0, 0)),     # b2
        ],
        out_specs=pl.BlockSpec((tb, n_out), lambda b, h, k: (b, 0)),
        scratch_shapes=[
            pltpu.VMEM((tb, th), jnp.float32),      # hidden accumulator
            pltpu.VMEM((tb, n_out), jnp.float32),   # output accumulator
        ],
        compiler_params=pltpu.CompilerParams(
            dimension_semantics=("parallel", "arbitrary", "arbitrary")),
    )(xf, w1_eff, shift_eff, params["w2"], b2r)
    return out


def _reference_pooler_head(x, params, eps=1e-5):
    """Pure-JAX reference mirroring the PyTorch module (eval mode)."""
    B = x.shape[0]
    pn = x.shape[-2] * x.shape[-1]
    xf = x.reshape(B, pn).astype(jnp.float32)
    h = xf @ params["w1"] + params["b1"]
    scale = params["gamma"] / jnp.sqrt(params["running_var"] + eps)
    h = (h - params["running_mean"]) * scale + params["beta"]
    h = jnp.maximum(h, 0.0)
    out = h @ params["w2"] + params["b2"]
    return out.astype(x.dtype)


if __name__ == "__main__":
    # Small shapes consistent with the module: pn = seq_len * d_model = 256,
    # hidden = pn // 2 = 128, output dimension = 64.
    B, seq_len, d_model = 2, 8, 32
    pn = seq_len * d_model
    hidden = pn // 2
    dimension = 64

    key = jax.random.PRNGKey(0)
    ks = jax.random.split(key, 9)
    x = jax.random.normal(ks[0], (B, seq_len, d_model), dtype=jnp.float32)
    params = dict(
        w1=0.05 * jax.random.normal(ks[1], (pn, hidden), jnp.float32),
        b1=0.05 * jax.random.normal(ks[2], (hidden,), jnp.float32),
        gamma=1.0 + 0.1 * jax.random.normal(ks[3], (hidden,), jnp.float32),
        beta=0.1 * jax.random.normal(ks[4], (hidden,), jnp.float32),
        running_mean=0.1 * jax.random.normal(ks[5], (hidden,), jnp.float32),
        running_var=0.5 + jnp.abs(jax.random.normal(ks[6], (hidden,), jnp.float32)),
        w2=0.05 * jax.random.normal(ks[7], (hidden, dimension), jnp.float32),
        b2=0.05 * jax.random.normal(ks[8], (dimension,), jnp.float32),
    )

    out = pooler_head(x, params)
    jax.block_until_ready(out)

    ref = _reference_pooler_head(x, params)
    assert out.shape == (B, dimension)
    assert jnp.allclose(out, ref, atol=1e-4, rtol=1e-4), (
        float(jnp.max(jnp.abs(out - ref))))

    print("KERNEL_OK")
</pallas_src>

<mosaic_0001>
module attributes {stable_mosaic.version = 11 : i64} {
  func.func @_pooler_head_kernel(%arg0: i32, %arg1: i32, %arg2: i32, %arg3: memref<2x256xf32, #tpu.memory_space<vmem>>, %arg4: memref<256x128xf32, #tpu.memory_space<vmem>>, %arg5: memref<1x128xf32, #tpu.memory_space<vmem>>, %arg6: memref<128x64xf32, #tpu.memory_space<vmem>>, %arg7: memref<1x64xf32, #tpu.memory_space<vmem>>, %arg8: memref<2x64xf32, #tpu.memory_space<vmem>>, %arg9: memref<2x128xf32, #tpu.memory_space<vmem>>, %arg10: memref<2x64xf32, #tpu.memory_space<vmem>>) attributes {dimension_semantics = [#tpu.dimension_semantics<parallel>, #tpu.dimension_semantics<arbitrary>, #tpu.dimension_semantics<arbitrary>], iteration_bounds = array<i64: 1, 1, 1>, scalar_prefetch = 0 : i64, scratch_operands = 2 : i64, tpu.core_type = #tpu.core_type<tc>, window_params = [{transform_indices = @transform_0, window_bounds = array<i64: 2, 256>}, {transform_indices = @transform_1, window_bounds = array<i64: 256, 128>}, {transform_indices = @transform_2, window_bounds = array<i64: 1, 128>}, {transform_indices = @transform_3, window_bounds = array<i64: 128, 64>}, {pipeline_mode = #tpu.pipeline_mode<synchronous>, transform_indices = @transform_4, window_bounds = array<i64: 1, 64>}, {transform_indices = @transform_5, window_bounds = array<i64: 2, 64>}]} {
    %c0_i32 = arith.constant 0 : i32
    %0 = arith.cmpi eq, %arg1, %c0_i32 : i32
    %c0_i32_0 = arith.constant 0 : i32
    %1 = arith.cmpi eq, %arg2, %c0_i32_0 : i32
    %2 = arith.andi %0, %1 : i1
    %3 = arith.extui %2 : i1 to i32
    %c0_i32_1 = arith.constant 0 : i32
    %4 = arith.cmpi ne, %3, %c0_i32_1 : i32
    scf.if %4 {
      %cst_16 = arith.constant 0.000000e+00 : f32
      %22 = vector.broadcast %cst_16 : f32 to vector<2x64xf32>
      %c0_17 = arith.constant 0 : index
      %c0_18 = arith.constant 0 : index
      %23 = vector.load %arg10[%c0_17, %c0_18] : memref<2x64xf32, #tpu.memory_space<vmem>>, vector<2x64xf32>
      tpu.vector_store %arg10[%c0_17, %c0_18], %22 {strides = array<i32>} : memref<2x64xf32, #tpu.memory_space<vmem>>, vector<2x64xf32>,
    } else {
    }
    %c0_i32_2 = arith.constant 0 : i32
    %5 = arith.cmpi eq, %arg2, %c0_i32_2 : i32
    %6 = arith.extui %5 : i1 to i32
    %c0_i32_3 = arith.constant 0 : i32
    %7 = arith.cmpi ne, %6, %c0_i32_3 : i32
    scf.if %7 {
      %cst_16 = arith.constant 0.000000e+00 : f32
      %22 = vector.broadcast %cst_16 : f32 to vector<2x128xf32>
      %c0_17 = arith.constant 0 : index
      %c0_18 = arith.constant 0 : index
      %23 = vector.load %arg9[%c0_17, %c0_18] : memref<2x128xf32, #tpu.memory_space<vmem>>, vector<2x128xf32>
      tpu.vector_store %arg9[%c0_17, %c0_18], %22 {strides = array<i32>} : memref<2x128xf32, #tpu.memory_space<vmem>>, vector<2x128xf32>,
    } else {
    }
    %c0 = arith.constant 0 : index
    %c0_4 = arith.constant 0 : index
    %8 = vector.load %arg9[%c0, %c0_4] : memref<2x128xf32, #tpu.memory_space<vmem>>, vector<2x128xf32>
    %c0_5 = arith.constant 0 : index
    %c0_6 = arith.constant 0 : index
    %9 = vector.load %arg3[%c0_5, %c0_6] : memref<2x256xf32, #tpu.memory_space<vmem>>, vector<2x256xf32>
    %c0_7 = arith.constant 0 : index
    %c0_8 = arith.constant 0 : index
    %10 = vector.load %arg4[%c0_7, %c0_8] : memref<256x128xf32, #tpu.memory_space<vmem>>, vector<256x128xf32>
    %cst = arith.constant dense<0.000000e+00> : vector<2x128xf32>
    %11 = tpu.matmul %9, %10, %cst {dimension_numbers = #tpu.dot_dimension_numbers<[1], [0], [0], [1], [0, 0, 1, 1], [], []>} : vector<2x256xf32>, vector<256x128xf32>, vector<2x128xf32> -> vector<2x128xf32>
    %12 = arith.addf %8, %11 : vector<2x128xf32>
    %c0_9 = arith.constant 0 : index
    %c0_10 = arith.constant 0 : index
    %13 = vector.load %arg9[%c0_9, %c0_10] : memref<2x128xf32, #tpu.memory_space<vmem>>, vector<2x128xf32>
    tpu.vector_store %arg9[%c0_9, %c0_10], %12 {strides = array<i32>} : memref<2x128xf32, #tpu.memory_space<vmem>>, vector<2x128xf32>,
    %c0_i32_11 = arith.constant 0 : i32
    %14 = arith.cmpi eq, %arg2, %c0_i32_11 : i32
    %15 = arith.extui %14 : i1 to i32
    %c0_i32_12 = arith.constant 0 : i32
    %16 = arith.cmpi ne, %15, %c0_i32_12 : i32
    scf.if %16 {
      %c0_16 = arith.constant 0 : index
      %c0_17 = arith.constant 0 : index
      %22 = vector.load %arg9[%c0_16, %c0_17] : memref<2x128xf32, #tpu.memory_space<vmem>>, vector<2x128xf32>
      %c0_18 = arith.constant 0 : index
      %c0_19 = arith.constant 0 : index
      %23 = vector.load %arg5[%c0_18, %c0_19] : memref<1x128xf32, #tpu.memory_space<vmem>>, vector<1x128xf32>
      %24 = vector.broadcast %23 : vector<1x128xf32> to vector<2x128xf32>
      %25 = arith.addf %22, %24 : vector<2x128xf32>
      %cst_20 = arith.constant 0.000000e+00 : f32
      %26 = vector.broadcast %cst_20 : f32 to vector<2x128xf32>
      %27 = arith.maximumf %25, %26 : vector<2x128xf32>
      %c0_21 = arith.constant 0 : index
      %c0_22 = arith.constant 0 : index
      %28 = vector.load %arg10[%c0_21, %c0_22] : memref<2x64xf32, #tpu.memory_space<vmem>>, vector<2x64xf32>
      %c0_23 = arith.constant 0 : index
      %c0_24 = arith.constant 0 : index
      %29 = vector.load %arg6[%c0_23, %c0_24] : memref<128x64xf32, #tpu.memory_space<vmem>>, vector<128x64xf32>
      %cst_25 = arith.constant dense<0.000000e+00> : vector<2x64xf32>
      %30 = tpu.matmul %27, %29, %cst_25 {dimension_numbers = #tpu.dot_dimension_numbers<[1], [0], [0], [1], [0, 0, 1, 1], [], []>} : vector<2x128xf32>, vector<128x64xf32>, vector<2x64xf32> -> vector<2x64xf32>
      %31 = arith.addf %28, %30 : vector<2x64xf32>
      %c0_26 = arith.constant 0 : index
      %c0_27 = arith.constant 0 : index
      %32 = vector.load %arg10[%c0_26, %c0_27] : memref<2x64xf32, #tpu.memory_space<vmem>>, vector<2x64xf32>
      tpu.vector_store %arg10[%c0_26, %c0_27], %31 {strides = array<i32>} : memref<2x64xf32, #tpu.memory_space<vmem>>, vector<2x64xf32>,
    } else {
    }
    %c0_i32_13 = arith.constant 0 : i32
    %17 = arith.cmpi eq, %arg1, %c0_i32_13 : i32
    %c0_i32_14 = arith.constant 0 : i32
    %18 = arith.cmpi eq, %arg2, %c0_i32_14 : i32
    %19 = arith.andi %17, %18 : i1
    %20 = arith.extui %19 : i1 to i32
    %c0_i32_15 = arith.constant 0 : i32
    %21 = arith.cmpi ne, %20, %c0_i32_15 : i32
    scf.if %21 {
      %c0_16 = arith.constant 0 : index
      %c0_17 = arith.constant 0 : index
      %22 = vector.load %arg10[%c0_16, %c0_17] : memref<2x64xf32, #tpu.memory_space<vmem>>, vector<2x64xf32>
      %c0_18 = arith.constant 0 : index
      %c0_19 = arith.constant 0 : index
      %23 = vector.load %arg7[%c0_18, %c0_19] : memref<1x64xf32, #tpu.memory_space<vmem>>, vector<1x64xf32>
      %24 = vector.broadcast %23 : vector<1x64xf32> to vector<2x64xf32>
      %25 = arith.addf %22, %24 : vector<2x64xf32>
      %c0_20 = arith.constant 0 : index
      %c0_21 = arith.constant 0 : index
      %26 = vector.load %arg8[%c0_20, %c0_21] : memref<2x64xf32, #tpu.memory_space<vmem>>, vector<2x64xf32>
      tpu.vector_store %arg8[%c0_20, %c0_21], %25 {strides = array<i32>} : memref<2x64xf32, #tpu.memory_space<vmem>>, vector<2x64xf32>,
    } else {
    }
    return
  }
  func.func @transform_0(%arg0: i32, %arg1: i32, %arg2: i32) -> (i32, i32) {
    %c0_i32 = arith.constant 0 : i32
    return %arg0, %arg2 : i32, i32
  }
  func.func @transform_1(%arg0: i32, %arg1: i32, %arg2: i32) -> (i32, i32) {
    %c0_i32 = arith.constant 0 : i32
    return %arg2, %arg1 : i32, i32
  }
  func.func @transform_2(%arg0: i32, %arg1: i32, %arg2: i32) -> (i32, i32) {
    %c0_i32 = arith.constant 0 : i32
    %c0_i32_0 = arith.constant 0 : i32
    return %c0_i32, %arg1 : i32, i32
  }
  func.func @transform_3(%arg0: i32, %arg1: i32, %arg2: i32) -> (i32, i32) {
    %c0_i32 = arith.constant 0 : i32
    %c0_i32_0 = arith.constant 0 : i32
    return %arg1, %c0_i32 : i32, i32
  }
  func.func @transform_4(%arg0: i32, %arg1: i32, %arg2: i32) -> (i32, i32) {
    %c0_i32 = arith.constant 0 : i32
    %c0_i32_0 = arith.constant 0 : i32
    %c0_i32_1 = arith.constant 0 : i32
    return %c0_i32, %c0_i32_0 : i32, i32
  }
  func.func @transform_5(%arg0: i32, %arg1: i32, %arg2: i32) -> (i32, i32) {
    %c0_i32 = arith.constant 0 : i32
    %c0_i32_0 = arith.constant 0 : i32
    return %arg0, %c0_i32 : i32, i32
  }
}

</mosaic_0001>

<llo_original>
// kernel: tpu_custom_call.1
$region0: #{tpu_custom_call.1}
  #allocation0 [shape = 'u32[]', space=smem, size = 0x4, offset = 0x4, fixed_abs, tag = 'smem constant byte address 0x4 - core index']
  #allocation1 [shape = 'u32[144,128]{1,0:T(1,128)}', space=vmem, size = 0x12000, scoped, tag = 'internal scratch']
  #allocation2 [shape = 'f32[2,128]{1,0:T(2,128)}', space=vmem, size = 0x400, scoped, tag = 'scratch operand']
  #allocation3 [shape = 'f32[2,64]{1,0:T(2,128)}', space=vmem, size = 0x400, scoped, tag = 'scratch operand']
  %s0 = inlined_call_operand.vmem [shape: f32[2,256], index: 0, kind: input, shape index: {}]
  %s1 = inlined_call_operand.hbm [shape: f32[256,128], index: 1, kind: input, shape index: {}]
  %s2 = inlined_call_operand.vmem [shape: f32[1,128], index: 2, kind: input, shape index: {}]
  %s3 = inlined_call_operand.vmem [shape: f32[128,64], index: 3, kind: input, shape index: {}]
  %s4 = inlined_call_operand.vmem [shape: f32[1,64], index: 4, kind: input, shape index: {}]
  %s5 = inlined_call_operand.hbm [shape: f32[2,64], index: 5, kind: output, shape index: {}]
  %s6 = sld [smem:[#allocation0]]
  $region50: #{tpu_custom_call.1} parent=0
    _
  %s8 = ssub.s32 1, %s6
  %s9 = scalar_select 0, %s8, %s6
  $region1: #{tpu_custom_call.1} parent=0
    #allocation4 [shape = 'u8[131072]{0}', space=vmem, size = 0x20000, scoped, tag = 'input window, operand 1, single buffered']
    #allocation5 [shape = 's32[1]{0}', space=sflag, size = 0x4, scoped, tag = 'scoped memory for tpu_custom_call.1']
    #allocation6 [shape = 's32[1]{0}', space=sflag, size = 0x4, scoped, tag = 'scoped memory for tpu_custom_call.1']
    #allocation7 [shape = 'u8[1024]{0}', space=vmem, size = 0x400, scoped, tag = 'output window, operand 0, single buffered']
    %10 = vsyncpa [#allocation5], 0
    %11 = vsyncpa [#allocation6], 0
    // Predicated region
    $region2: #{tpu_custom_call.1} parent=1 // pred_check
      _
    $region3: #{tpu_custom_call.1} parent=1 // pred_check_branch
      %13 = sbr.rel (0) target = $region5
    $region4: #{tpu_custom_call.1} parent=1 // pred_region
      _
    $region5: #{tpu_custom_call.1} parent=1 // pred_fallthru
      _
    // Predicated region
    $region6: #{tpu_custom_call.1} parent=1 // pred_check
      _
    $region7: #{tpu_custom_call.1} parent=1 // pred_check_branch
      %15 = sbr.rel (0) target = $region9
    $region8: #{tpu_custom_call.1} parent=1 // pred_region
      %s17 = ssub.s32 4096, 4096
      %18 = vsyncadd [#allocation5], %s17
      %s19 = sshll.u32 [#allocation4], 4
      %s20 = int_to_ptr.vmem [resolvable:$true] %s19
      %25 = dma.hbm_to_vmem [thread:$0]  %s1, 4096, %s20, [#allocation5], 128, 128, 8
    $region9: #{tpu_custom_call.1} parent=1 // pred_fallthru
      _
    // Predicated region
    $region10: #{tpu_custom_call.1} parent=1 // pred_check
      _
    $region11: #{tpu_custom_call.1} parent=1 // pred_check_branch
      %27 = sbr.rel (0) target = $region13
    $region12: #{tpu_custom_call.1} parent=1 // pred_region
      _
    $region13: #{tpu_custom_call.1} parent=1 // pred_fallthru
      _
    // Predicated region
    $region14: #{tpu_custom_call.1} parent=1 // pred_check
      _
    $region15: #{tpu_custom_call.1} parent=1 // pred_check_branch
      %29 = sbr.rel (0) target = $region17
    $region16: #{tpu_custom_call.1} parent=1 // pred_region
      _
    $region17: #{tpu_custom_call.1} parent=1 // pred_fallthru
      _
    // Predicated region
    $region18: #{tpu_custom_call.1} parent=1 // pred_check
      _
    $region19: #{tpu_custom_call.1} parent=1 // pred_check_branch
      %31 = sbr.rel (0) target = $region21
    $region20: #{tpu_custom_call.1} parent=1 // pred_region
      _
    $region21: #{tpu_custom_call.1} parent=1 // pred_fallthru
      _
    // Predicated region
    $region22: #{tpu_custom_call.1} parent=1 // pred_check
      _
    $region23: #{tpu_custom_call.1} parent=1 // pred_check_branch
      %33 = sbr.rel (0) target = $region25
    $region24: #{tpu_custom_call.1} parent=1 // pred_region
      %34 = dma.done [#allocation5], 4096
    $region25: #{tpu_custom_call.1} parent=1 // pred_fallthru
      _
    %p35 = scmp.eq.s32.totalorder 0, 0
    %p36 = scmp.eq.s32.totalorder 0, 0
    %p37 = pnand %p35, %p36
    %p38 = pneg %p37
    // Predicated region
    $region26: #{tpu_custom_call.1} parent=1 // pred_check
      _
    $region27: #{tpu_custom_call.1} parent=1 // pred_check_branch
      %40 = sbr.rel (%p37) target = $region29
    $region28: #{tpu_custom_call.1} parent=1 // pred_region
      %vm41 = vcmask 517120
      %42 = vst.msk [vmem:[#allocation3] sm:$0x3] %vm41, 0.0
    $region29: #{tpu_custom_call.1} parent=1 // pred_fallthru
      _
    // Predicated region
    $region30: #{tpu_custom_call.1} parent=1 // pred_check
      %p43 = pneg %p36
    $region31: #{tpu_custom_call.1} parent=1 // pred_check_branch
      %45 = sbr.rel (%p43) target = $region33
    $region32: #{tpu_custom_call.1} parent=1 // pred_region
      %46 = vst [vmem:[#allocation2] sm:$0x3] 0.0
    $region33: #{tpu_custom_call.1} parent=1 // pred_fallthru
      _
    %v47 = vld [vmem:[#allocation2] sm:$0x3]
    %v48 = vld [vmem:[%s0] sm:$0xf]
    %v49 = vld [vmem:[#allocation4] sm:$0xff]
    %v50 = vld [vmem:[#allocation4 + $0x8] sm:$0xff]
    %v51 = vld [vmem:[#allocation4 + $0x10] sm:$0xff]
    %v52 = vld [vmem:[#allocation4 + $0x18] sm:$0xff]
    %v53 = vld [vmem:[#allocation4 + $0x20] sm:$0xff]
    %v54 = vld [vmem:[#allocation4 + $0x28] sm:$0xff]
    %v55 = vld [vmem:[#allocation4 + $0x30] sm:$0xff]
    %v56 = vld [vmem:[#allocation4 + $0x38] sm:$0xff]
    %v57 = vld [vmem:[#allocation4 + $0x40] sm:$0xff]
    %v58 = vld [vmem:[#allocation4 + $0x48] sm:$0xff]
    %v59 = vld [vmem:[#allocation4 + $0x50] sm:$0xff]
    %v60 = vld [vmem:[#allocation4 + $0x58] sm:$0xff]
    %v61 = vld [vmem:[#allocation4 + $0x60] sm:$0xff]
    %v62 = vld [vmem:[#allocation4 + $0x68] sm:$0xff]
    %v63 = vld [vmem:[#allocation4 + $0x70] sm:$0xff]
    %v64 = vld [vmem:[#allocation4 + $0x78] sm:$0xff]
    %v65 = vld [vmem:[#allocation4 + $0x80] sm:$0xff]
    %v66 = vld [vmem:[#allocation4 + $0x88] sm:$0xff]
    %v67 = vld [vmem:[#allocation4 + $0x90] sm:$0xff]
    %v68 = vld [vmem:[#allocation4 + $0x98] sm:$0xff]
    %v69 = vld [vmem:[#allocation4 + $0xa0] sm:$0xff]
    %v70 = vld [vmem:[#allocation4 + $0xa8] sm:$0xff]
    %v71 = vld [vmem:[#allocation4 + $0xb0] sm:$0xff]
    %v72 = vld [vmem:[#allocation4 + $0xb8] sm:$0xff]
    %v73 = vld [vmem:[#allocation4 + $0xc0] sm:$0xff]
    %v74 = vld [vmem:[#allocation4 + $0xc8] sm:$0xff]
    %v75 = vld [vmem:[#allocation4 + $0xd0] sm:$0xff]
    %v76 = vld [vmem:[#allocation4 + $0xd8] sm:$0xff]
    %v77 = vld [vmem:[#allocation4 + $0xe0] sm:$0xff]
    %v78 = vld [vmem:[#allocation4 + $0xe8] sm:$0xff]
    %v79 = vld [vmem:[#allocation4 + $0xf0] sm:$0xff]
    %v80 = vld [vmem:[#allocation4 + $0xf8] sm:$0xff]
    %v83 = vunpack.c.l.s4 1983009808
    %v84 = vunpack.c.0.s8 %v83
    %v85 = vlaneseq
    %v86 = vshrl.u32 %v85, 7
    %v87 = vsub.s32 %v84, %v86
    %v88 = vrot.slane %v48, %v87
    %v89 = vcombine.high %v88, %v88
    %92 = vmatprep.subr.mxu0 0.0
    %93 = vmatpush1.msra.mxu0 %v49
    %94 = vmatprep.subr.mxu0 0.0
    %95 = vmatpush1.msra.mxu0 %v50
    %96 = vmatprep.subr.mxu0 0.0
    %97 = vmatpush1.msra.mxu0 %v51
    %98 = vmatprep.subr.mxu0 0.0
    %99 = vmatpush1.msra.mxu0 %v52
    %100 = vmatprep.subr.mxu0 0.0
    %101 = vmatpush1.msra.mxu0 %v53
    %102 = vmatprep.subr.mxu0 0.0
    %103 = vmatpush1.msra.mxu0 %v54
    %104 = vmatprep.subr.mxu0 0.0
    %105 = vmatpush1.msra.mxu0 %v55
    %106 = vmatprep.subr.mxu0 0.0
    %107 = vmatpush1.msra.mxu0 %v56
    %108 = vmatprep.subr.mxu0 0.0
    %109 = vmatpush1.msra.mxu0 %v57
    %110 = vmatprep.subr.mxu0 0.0
    %111 = vmatpush1.msra.mxu0 %v58
    %112 = vmatprep.subr.mxu0 0.0
    %113 = vmatpush1.msra.mxu0 %v59
    %114 = vmatprep.subr.mxu0 0.0
    %115 = vmatpush1.msra.mxu0 %v60
    %116 = vmatprep.subr.mxu0 0.0
    %117 = vmatpush1.msra.mxu0 %v61
    %118 = vmatprep.subr.mxu0 0.0
    %119 = vmatpush1.msra.mxu0 %v62
    %120 = vmatprep.subr.mxu0 0.0
    %121 = vmatpush1.msra.mxu0 %v63
    %122 = vmatprep.subr.mxu0 0.0
    %123 = vmatpush1.msra.mxu0 %v64
    %124 = vmatprep.subr.mxu0 0.0
    %125 = vmatpush1.msra.mxu0 %v65
    %126 = vmatprep.subr.mxu0 0.0
    %127 = vmatpush1.msra.mxu0 %v66
    %128 = vmatprep.subr.mxu0 0.0
    %129 = vmatpush1.msra.mxu0 %v67
    %130 = vmatprep.subr.mxu0 0.0
    %131 = vmatpush1.msra.mxu0 %v68
    %132 = vmatprep.subr.mxu0 0.0
    %133 = vmatpush1.msra.mxu0 %v69
    %134 = vmatprep.subr.mxu0 0.0
    %135 = vmatpush1.msra.mxu0 %v70
    %136 = vmatprep.subr.mxu0 0.0
    %137 = vmatpush1.msra.mxu0 %v71
    %138 = vmatprep.subr.mxu0 0.0
    %139 = vmatpush1.msra.mxu0 %v72
    %140 = vmatprep.subr.mxu0 0.0
    %141 = vmatpush1.msra.mxu0 %v73
    %142 = vmatprep.subr.mxu0 0.0
    %143 = vmatpush1.msra.mxu0 %v74
    %144 = vmatprep.subr.mxu0 0.0
    %145 = vmatpush1.msra.mxu0 %v75
    %146 = vmatprep.subr.mxu0 0.0
    %147 = vmatpush1.msra.mxu0 %v76
    %148 = vmatprep.subr.mxu0 0.0
    %149 = vmatpush1.msra.mxu0 %v77
    %150 = vmatprep.subr.mxu0 0.0
    %151 = vmatpush1.msra.mxu0 %v78
    %152 = vmatprep.subr.mxu0 0.0
    %153 = vmatpush1.msra.mxu0 %v79
    %154 = vmatprep.subr.mxu0 0.0
    %155 = vmatpush1.msra.mxu0 %v80
    %156 = vmatprep.mubr.f32.mxu0 %v89
    %157 = vmatmul.mubr.f32.gmra.mrb[0].mxu0 %v88
    %v158 = vpop.f32.mrb[0].mxu0
    %v159 = vadd.f32 0.0, %v158
    %v160 = vpop.f32.mrb[0].mxu0
    %161 = vdwg.mxu0
    %v162 = vadd.f32 %v47, %v159
    %163 = vst [vmem:[#allocation2] sm:$0x3] %v162
    // Predicated region
    $region34: #{tpu_custom_call.1} parent=1 // pred_check
      %p164 = pneg %p36
    $region35: #{tpu_custom_call.1} parent=1 // pred_check_branch
      %166 = sbr.rel (%p164) target = $region37
    $region36: #{tpu_custom_call.1} parent=1 // pred_region
      %v167 = vld [vmem:[#allocation2] sm:$0x3]
      %v168 = vld [vmem:[%s2] sm:$0x1]
      %v170 = vlaneseq
      %v171 = vshrl.u32 %v170, 7
      %v172 = vsub.s32 0, %v171
      %v173 = vrot.slane %v168, %v172
      %v175 = vadd.f32 %v167, %v173
      %v176 = vmax.f32 %v175, 0.0
      %v177 = vld [vmem:[#allocation3] sm:$0x3]
      %v178 = vld [vmem:[%s3] sm:$0xff]
      %v179 = vld [vmem:[%s3 + $0x8] sm:$0xff]
      %v180 = vld [vmem:[%s3 + $0x10] sm:$0xff]
      %v181 = vld [vmem:[%s3 + $0x18] sm:$0xff]
      %v182 = vld [vmem:[%s3 + $0x20] sm:$0xff]
      %v183 = vld [vmem:[%s3 + $0x28] sm:$0xff]
      %v184 = vld [vmem:[%s3 + $0x30] sm:$0xff]
      %v185 = vld [vmem:[%s3 + $0x38] sm:$0xff]
      %v186 = vld [vmem:[%s3 + $0x40] sm:$0xff]
      %v187 = vld [vmem:[%s3 + $0x48] sm:$0xff]
      %v188 = vld [vmem:[%s3 + $0x50] sm:$0xff]
      %v189 = vld [vmem:[%s3 + $0x58] sm:$0xff]
      %v190 = vld [vmem:[%s3 + $0x60] sm:$0xff]
      %v191 = vld [vmem:[%s3 + $0x68] sm:$0xff]
      %v192 = vld [vmem:[%s3 + $0x70] sm:$0xff]
      %v193 = vld [vmem:[%s3 + $0x78] sm:$0xff]
      %194 = vmatprep.subr.mxu0 0.0
      %195 = vmatpush1.msra.mxu0 %v178
      %196 = vmatprep.subr.mxu0 0.0
      %197 = vmatpush1.msra.mxu0 %v179
      %198 = vmatprep.subr.mxu0 0.0
      %199 = vmatpush1.msra.mxu0 %v180
      %200 = vmatprep.subr.mxu0 0.0
      %201 = vmatpush1.msra.mxu0 %v181
      %202 = vmatprep.subr.mxu0 0.0
      %203 = vmatpush1.msra.mxu0 %v182
      %204 = vmatprep.subr.mxu0 0.0
      %205 = vmatpush1.msra.mxu0 %v183
      %206 = vmatprep.subr.mxu0 0.0
      %207 = vmatpush1.msra.mxu0 %v184
      %208 = vmatprep.subr.mxu0 0.0
      %209 = vmatpush1.msra.mxu0 %v185
      %210 = vmatprep.subr.mxu0 0.0
      %211 = vmatpush1.msra.mxu0 %v186
      %212 = vmatprep.subr.mxu0 0.0
      %213 = vmatpush1.msra.mxu0 %v187
      %214 = vmatprep.subr.mxu0 0.0
      %215 = vmatpush1.msra.mxu0 %v188
      %216 = vmatprep.subr.mxu0 0.0
      %217 = vmatpush1.msra.mxu0 %v189
      %218 = vmatprep.subr.mxu0 0.0
      %219 = vmatpush1.msra.mxu0 %v190
      %220 = vmatprep.subr.mxu0 0.0
      %221 = vmatpush1.msra.mxu0 %v191
      %222 = vmatprep.subr.mxu0 0.0
      %223 = vmatpush1.msra.mxu0 %v192
      %224 = vmatprep.subr.mxu0 0.0
      %225 = vmatpush1.msra.mxu0 %v193
      %226 = vmatprep.subr.mxu0 0.0
      %227 = vmatpush1.msra.mxu0 0.0
      %228 = vmatprep.subr.mxu0 0.0
      %229 = vmatpush1.msra.mxu0 0.0
      %230 = vmatprep.subr.mxu0 0.0
      %231 = vmatpush1.msra.mxu0 0.0
      %232 = vmatprep.subr.mxu0 0.0
      %233 = vmatpush1.msra.mxu0 0.0
      %234 = vmatprep.subr.mxu0 0.0
      %235 = vmatpush1.msra.mxu0 0.0
      %236 = vmatprep.subr.mxu0 0.0
      %237 = vmatpush1.msra.mxu0 0.0
      %238 = vmatprep.subr.mxu0 0.0
      %239 = vmatpush1.msra.mxu0 0.0
      %240 = vmatprep.subr.mxu0 0.0
      %241 = vmatpush1.msra.mxu0 0.0
      %242 = vmatprep.subr.mxu0 0.0
      %243 = vmatpush1.msra.mxu0 0.0
      %244 = vmatprep.subr.mxu0 0.0
      %245 = vmatpush1.msra.mxu0 0.0
      %246 = vmatprep.subr.mxu0 0.0
      %247 = vmatpush1.msra.mxu0 0.0
      %248 = vmatprep.subr.mxu0 0.0
      %249 = vmatpush1.msra.mxu0 0.0
      %250 = vmatprep.subr.mxu0 0.0
      %251 = vmatpush1.msra.mxu0 0.0
      %252 = vmatprep.subr.mxu0 0.0
      %253 = vmatpush1.msra.mxu0 0.0
      %254 = vmatprep.subr.mxu0 0.0
      %255 = vmatpush1.msra.mxu0 0.0
      %256 = vmatprep.subr.mxu0 0.0
      %257 = vmatpush1.msra.mxu0 0.0
      %258 = vmatprep.mubr.f32.mxu0 0.0
      %259 = vmatmul.mubr.f32.gmra.mrb[0].mxu0 %v176
      %v260 = vpop.f32.mrb[0].mxu0
      %v261 = vadd.f32 0.0, %v260
      %v262 = vpop.f32.mrb[0].mxu0
      %263 = vdwg.mxu0
      %v264 = vadd.f32 %v177, %v261
      %vm265 = vcmask 517120
      %266 = vst.msk [vmem:[#allocation3] sm:$0x3] %vm265, %v264
    $region37: #{tpu_custom_call.1} parent=1 // pred_fallthru
      _
    // Predicated region
    $region38: #{tpu_custom_call.1} parent=1 // pred_check
      _
    $region39: #{tpu_custom_call.1} parent=1 // pred_check_branch
      %268 = sbr.rel (%p37) target = $region41
    $region40: #{tpu_custom_call.1} parent=1 // pred_region
      %v269 = vld [vmem:[#allocation3] sm:$0x3]
      %v270 = vld [vmem:[%s4] sm:$0x1]
      %v272 = vlaneseq
      %v273 = vshrl.u32 %v272, 7
      %v274 = vsub.s32 0, %v273
      %v275 = vrot.slane %v270, %v274
      %v277 = vadd.f32 %v269, %v275
      %vm278 = vcmask 517120
      %279 = vst.msk [vmem:[#allocation7] sm:$0x3] %vm278, %v277
    $region41: #{tpu_custom_call.1} parent=1 // pred_fallthru
      _
    // Predicated region
    $region42: #{tpu_custom_call.1} parent=1 // pred_check
      _
    $region43: #{tpu_custom_call.1} parent=1 // pred_check_branch
      %281 = sbr.rel (0) target = $region45
    $region44: #{tpu_custom_call.1} parent=1 // pred_region
      %s283 = ssub.s32 32, 32
      %284 = vsyncadd [#allocation6], %s283
      %s286 = sshll.u32 [#allocation7], 4
      %s287 = int_to_ptr.vmem [resolvable:$true] %s286
      %289 = dma.vmem_to_hbm [thread:$0]  %s287, 32, %s5, [#allocation6]
    $region45: #{tpu_custom_call.1} parent=1 // pred_fallthru
      _
    // Predicated region
    $region46: #{tpu_custom_call.1} parent=1 // pred_check
      _
    $region47: #{tpu_custom_call.1} parent=1 // pred_check_branch
      %291 = sbr.rel (0) target = $region49
    $region48: #{tpu_custom_call.1} parent=1 // pred_region
      %292 = dma.done [#allocation6], 32
    $region49: #{tpu_custom_call.1} parent=1 // pred_fallthru
      _
    %293 = vsyncpa [#allocation5], 1
    %294 = vsyncpa [#allocation6], 1

</llo_original>
